<compile_context>
chip_gen: v6e
topology: v6e:2x2x1
jax: 0.10.0
libtpu: 0.0.40
codegen_flags: <defaults>
</compile_context>

<pallas_src>
import functools

import jax
import jax.numpy as jnp
from jax import lax
from jax.experimental import pallas as pl
from jax.experimental.pallas import tpu as pltpu

NUM_INPUTS = 28 * 28      # 784
NUM_HIDDENS = 256
NUM_OUTPUTS = 10
P_DROP = 0.3

IN_PAD = 896              # 7 * 128 lane-dense feature dim
OUT_PAD = 128             # lane-dense output dim


def _round_up(x, m):
    return ((x + m - 1) // m) * m


def _keep_mask(shape, seed_u32, stream, row0_i32, threshold31):
    """Stateless counter-based Bernoulli keep mask.

    Hash of (global_row, col, seed, stream) via murmur3 fmix32; keep element iff the
    top-31 hash bits are >= threshold31 (threshold31 ~= p * 2^31).  Pure integer VPU
    ops; identical results for any batch tiling.
    """
    r = lax.broadcasted_iota(jnp.int32, shape, 0) + row0_i32          # global row id
    c = lax.broadcasted_iota(jnp.int32, shape, 1)
    x = r.astype(jnp.uint32) * jnp.uint32(1 << 10) + c.astype(jnp.uint32)
    x = x ^ (seed_u32 * jnp.uint32(0x9E3779B1))
    x = x + jnp.uint32(stream) * jnp.uint32(0x85EBCA77)
    # murmur3 fmix32
    x = x ^ (x >> 16)
    x = x * jnp.uint32(0x7FEB352D)
    x = x ^ (x >> 15)
    x = x * jnp.uint32(0x846CA68B)
    x = x ^ (x >> 16)
    return (x >> 1).astype(jnp.int32) >= jnp.int32(threshold31)       # keep-mask


def mlp_dropout_kernel(seed_ref, x_ref, w1_ref, b1_ref, w2_ref, b2_ref, o_ref,
                       *, threshold31, use_dropout, tile_b, mxu_dtype):
    # x_ref: (tile_b, IN_PAD) f32, w1: (IN_PAD, 256) mxu_dtype, b1: (1, 256) f32,
    # w2: (256, OUT_PAD) mxu_dtype, b2: (1, OUT_PAD) f32, o_ref: (tile_b, OUT_PAD) f32
    x = x_ref[...]
    row0 = pl.program_id(0) * tile_b                    # global row offset of this tile

    if use_dropout:
        # NOTE: mask realization differs from torch's RNG but matches nn.Dropout
        # semantics (Bernoulli(1-p) keep; the 1/(1-p) scale is folded into w1/w2).
        seed_u32 = seed_ref[0].astype(jnp.uint32)
        keep1 = _keep_mask(x.shape, seed_u32, 1, row0, threshold31)
        x = jnp.where(keep1, x, 0.0)

    # hidden_layer (MXU, f32 accumulation)
    h = jnp.dot(x.astype(mxu_dtype), w1_ref[...],
                preferred_element_type=jnp.float32) + b1_ref[...]

    if use_dropout:
        keep2 = _keep_mask(h.shape, seed_u32, 2, row0, threshold31)
        h = jnp.where(keep2, h, 0.0)

    # relu
    h = jnp.maximum(h, 0.0)

    # output_layer (lane-dense 128-wide store; cols 10..127 are zero)
    o_ref[...] = (jnp.dot(h.astype(mxu_dtype), w2_ref[...],
                          preferred_element_type=jnp.float32) + b2_ref[...])


def mynet_nn_forward(x, params, *, p=P_DROP, training=True, seed=0, tile_b=256,
                     mxu_dtype=jnp.bfloat16):
    """x: (B, 1, 28, 28) or (B, 784) float32. Returns (B, 10) float32."""
    w1, b1, w2, b2 = params                              # torch layout: (out, in), (out,)
    B = x.shape[0]
    xf = x.reshape(B, -1).astype(jnp.float32)            # nn.Flatten
    assert xf.shape[1] == NUM_INPUTS

    # lane-dense feature dim: 784 -> 896 (zero columns)
    xf = jnp.pad(xf, ((0, 0), (0, IN_PAD - NUM_INPUTS)))

    # batch tiling: clamp tile to the (8-aligned) batch, pad batch up to a multiple
    tile_b = max(8, min(int(tile_b), _round_up(B, 8)))
    B_pad = _round_up(B, tile_b)
    if B_pad != B:
        xf = jnp.pad(xf, ((0, B_pad - B), (0, 0)))

    use_dropout = bool(training) and float(p) > 0.0
    scale = (1.0 / (1.0 - float(p))) if use_dropout else 1.0
    threshold31 = int(float(p) * (1 << 31)) if use_dropout else 0

    # weights as (in, out); fold the 1/(1-p) dropout scales into w1 and w2
    # (dropout(x) @ W1^T == (mask*x) @ (W1^T/keep); relu commutes with the positive scale)
    w1_t = jnp.pad(w1.T.astype(jnp.float32) * scale,
                   ((0, IN_PAD - NUM_INPUTS), (0, 0))).astype(mxu_dtype)
    b1_r = b1.reshape(1, NUM_HIDDENS).astype(jnp.float32)
    w2_t = jnp.pad(w2.T.astype(jnp.float32) * scale,
                   ((0, 0), (0, OUT_PAD - NUM_OUTPUTS))).astype(mxu_dtype)
    b2_r = jnp.pad(b2.reshape(1, NUM_OUTPUTS).astype(jnp.float32),
                   ((0, 0), (0, OUT_PAD - NUM_OUTPUTS)))

    seed_arr = jnp.array([seed], dtype=jnp.int32)

    kernel = functools.partial(
        mlp_dropout_kernel,
        threshold31=threshold31, use_dropout=use_dropout,
        tile_b=tile_b, mxu_dtype=mxu_dtype)

    grid = (B_pad // tile_b,)
    out = pl.pallas_call(
        kernel,
        out_shape=jax.ShapeDtypeStruct((B_pad, OUT_PAD), jnp.float32),
        grid_spec=pltpu.PrefetchScalarGridSpec(
            num_scalar_prefetch=1,
            grid=grid,
            in_specs=[
                pl.BlockSpec((tile_b, IN_PAD), lambda i, seed: (i, 0)),
                pl.BlockSpec((IN_PAD, NUM_HIDDENS), lambda i, seed: (0, 0)),
                pl.BlockSpec((1, NUM_HIDDENS), lambda i, seed: (0, 0)),
                pl.BlockSpec((NUM_HIDDENS, OUT_PAD), lambda i, seed: (0, 0)),
                pl.BlockSpec((1, OUT_PAD), lambda i, seed: (0, 0)),
            ],
            out_specs=pl.BlockSpec((tile_b, OUT_PAD), lambda i, seed: (i, 0)),
        ),
        compiler_params=pltpu.CompilerParams(
            # Stateless (counter-based) dropout -> batch axis is truly parallel;
            # lets v7x shard the grid across both TensorCores.
            dimension_semantics=("parallel",),
        ),
    )(seed_arr, xf, w1_t, b1_r, w2_t, b2_r)

    return out[:B, :NUM_OUTPUTS]


def init_params(key):
    """Deterministic init mimicking torch.nn.Linear defaults U[-1/sqrt(fan_in), 1/sqrt(fan_in)]."""
    k1, k2, k3, k4 = jax.random.split(key, 4)
    bound1 = 1.0 / jnp.sqrt(NUM_INPUTS)
    bound2 = 1.0 / jnp.sqrt(NUM_HIDDENS)
    w1 = jax.random.uniform(k1, (NUM_HIDDENS, NUM_INPUTS), jnp.float32, -bound1, bound1)
    b1 = jax.random.uniform(k2, (NUM_HIDDENS,), jnp.float32, -bound1, bound1)
    w2 = jax.random.uniform(k3, (NUM_OUTPUTS, NUM_HIDDENS), jnp.float32, -bound2, bound2)
    b2 = jax.random.uniform(k4, (NUM_OUTPUTS,), jnp.float32, -bound2, bound2)
    return w1, b1, w2, b2


def reference_forward_eval(x, params, mxu_dtype=jnp.bfloat16):
    """Pure-JAX eval-mode reference (dropout=identity), same matmul dtypes as the kernel."""
    w1, b1, w2, b2 = params
    xf = x.reshape(x.shape[0], -1).astype(jnp.float32)
    h = jnp.dot(xf.astype(mxu_dtype), w1.T.astype(mxu_dtype),
                preferred_element_type=jnp.float32) + b1
    h = jnp.maximum(h, 0.0)
    return jnp.dot(h.astype(mxu_dtype), w2.T.astype(mxu_dtype),
                   preferred_element_type=jnp.float32) + b2


if __name__ == "__main__":
    key = jax.random.PRNGKey(0)
    kx, kp = jax.random.split(key)

    B = 32
    x = jax.random.normal(kx, (B, 1, 28, 28), dtype=jnp.float32)
    params = init_params(kp)

    # 1) eval mode (dropout = identity): compare against pure-JAX reference
    out_eval = jax.block_until_ready(mynet_nn_forward(x, params, training=False))
    ref = reference_forward_eval(x, params)
    assert out_eval.shape == (B, NUM_OUTPUTS)
    assert jnp.allclose(out_eval, ref, atol=2e-2, rtol=2e-2), "eval-mode mismatch"

    # 2) training mode with dropout p=0.3: deterministic, grid-invariant mask
    out_a = jax.block_until_ready(
        mynet_nn_forward(x, params, p=P_DROP, training=True, seed=1234, tile_b=32))
    out_b = jax.block_until_ready(
        mynet_nn_forward(x, params, p=P_DROP, training=True, seed=1234, tile_b=8))
    assert out_a.shape == (B, NUM_OUTPUTS)
    assert bool(jnp.all(jnp.isfinite(out_a)))
    # same seed, different batch tiling -> identical dropout realization
    assert jnp.allclose(out_a, out_b, atol=1e-5, rtol=1e-5), "dropout not grid-invariant"

    print("KERNEL_OK")
</pallas_src>

<mosaic_0001>
module attributes {stable_mosaic.version = 11 : i64} {
  func.func @mlp_dropout_kernel(%arg0: i32, %arg1: memref<1xi32, #tpu.memory_space<smem>>, %arg2: memref<32x896xf32, #tpu.memory_space<vmem>>, %arg3: memref<896x256xbf16, #tpu.memory_space<vmem>>, %arg4: memref<1x256xf32, #tpu.memory_space<vmem>>, %arg5: memref<256x128xbf16, #tpu.memory_space<vmem>>, %arg6: memref<1x128xf32, #tpu.memory_space<vmem>>, %arg7: memref<32x128xf32, #tpu.memory_space<vmem>>) attributes {dimension_semantics = [#tpu.dimension_semantics<parallel>], iteration_bounds = array<i64: 1>, scalar_prefetch = 1 : i64, scratch_operands = 0 : i64, tpu.core_type = #tpu.core_type<tc>, window_params = [{transform_indices = @transform_0, window_bounds = array<i64: 32, 896>}, {pipeline_mode = #tpu.pipeline_mode<synchronous>, transform_indices = @transform_1, window_bounds = array<i64: 896, 256>}, {pipeline_mode = #tpu.pipeline_mode<synchronous>, transform_indices = @transform_2, window_bounds = array<i64: 1, 256>}, {pipeline_mode = #tpu.pipeline_mode<synchronous>, transform_indices = @transform_3, window_bounds = array<i64: 256, 128>}, {pipeline_mode = #tpu.pipeline_mode<synchronous>, transform_indices = @transform_4, window_bounds = array<i64: 1, 128>}, {transform_indices = @transform_5, window_bounds = array<i64: 32, 128>}]} {
    %c0 = arith.constant 0 : index
    %c0_0 = arith.constant 0 : index
    %0 = vector.load %arg2[%c0, %c0_0] : memref<32x896xf32, #tpu.memory_space<vmem>>, vector<32x896xf32>
    %1 = arith.truncf %0 : vector<32x896xf32> to vector<32x896xbf16>
    %c0_1 = arith.constant 0 : index
    %c0_2 = arith.constant 0 : index
    %2 = vector.load %arg3[%c0_1, %c0_2] : memref<896x256xbf16, #tpu.memory_space<vmem>>, vector<896x256xbf16>
    %cst = arith.constant dense<0.000000e+00> : vector<32x256xf32>
    %3 = tpu.matmul %1, %2, %cst {dimension_numbers = #tpu.dot_dimension_numbers<[1], [0], [0], [1], [0, 0, 1, 1], [], []>} : vector<32x896xbf16>, vector<896x256xbf16>, vector<32x256xf32> -> vector<32x256xf32>
    %c0_3 = arith.constant 0 : index
    %c0_4 = arith.constant 0 : index
    %4 = vector.load %arg4[%c0_3, %c0_4] : memref<1x256xf32, #tpu.memory_space<vmem>>, vector<1x256xf32>
    %5 = vector.broadcast %4 : vector<1x256xf32> to vector<32x256xf32>
    %6 = arith.addf %3, %5 : vector<32x256xf32>
    %cst_5 = arith.constant 0.000000e+00 : f32
    %7 = vector.broadcast %cst_5 : f32 to vector<32x256xf32>
    %8 = arith.maximumf %6, %7 : vector<32x256xf32>
    %9 = arith.truncf %8 : vector<32x256xf32> to vector<32x256xbf16>
    %c0_6 = arith.constant 0 : index
    %c0_7 = arith.constant 0 : index
    %10 = vector.load %arg5[%c0_6, %c0_7] : memref<256x128xbf16, #tpu.memory_space<vmem>>, vector<256x128xbf16>
    %cst_8 = arith.constant dense<0.000000e+00> : vector<32x128xf32>
    %11 = tpu.matmul %9, %10, %cst_8 {dimension_numbers = #tpu.dot_dimension_numbers<[1], [0], [0], [1], [0, 0, 1, 1], [], []>} : vector<32x256xbf16>, vector<256x128xbf16>, vector<32x128xf32> -> vector<32x128xf32>
    %c0_9 = arith.constant 0 : index
    %c0_10 = arith.constant 0 : index
    %12 = vector.load %arg6[%c0_9, %c0_10] : memref<1x128xf32, #tpu.memory_space<vmem>>, vector<1x128xf32>
    %13 = vector.broadcast %12 : vector<1x128xf32> to vector<32x128xf32>
    %14 = arith.addf %11, %13 : vector<32x128xf32>
    %c0_11 = arith.constant 0 : index
    %c0_12 = arith.constant 0 : index
    %15 = vector.load %arg7[%c0_11, %c0_12] : memref<32x128xf32, #tpu.memory_space<vmem>>, vector<32x128xf32>
    tpu.vector_store %arg7[%c0_11, %c0_12], %14 {strides = array<i32>} : memref<32x128xf32, #tpu.memory_space<vmem>>, vector<32x128xf32>,
    return
  }
  func.func @transform_0(%arg0: i32, %arg1: memref<1xi32, #tpu.memory_space<smem>>) -> (i32, i32) {
    %c0_i32 = arith.constant 0 : i32
    %c0_i32_0 = arith.constant 0 : i32
    return %arg0, %c0_i32 : i32, i32
  }
  func.func @transform_1(%arg0: i32, %arg1: memref<1xi32, #tpu.memory_space<smem>>) -> (i32, i32) {
    %c0_i32 = arith.constant 0 : i32
    %c0_i32_0 = arith.constant 0 : i32
    %c0_i32_1 = arith.constant 0 : i32
    return %c0_i32, %c0_i32_0 : i32, i32
  }
  func.func @transform_2(%arg0: i32, %arg1: memref<1xi32, #tpu.memory_space<smem>>) -> (i32, i32) {
    %c0_i32 = arith.constant 0 : i32
    %c0_i32_0 = arith.constant 0 : i32
    %c0_i32_1 = arith.constant 0 : i32
    return %c0_i32, %c0_i32_0 : i32, i32
  }
  func.func @transform_3(%arg0: i32, %arg1: memref<1xi32, #tpu.memory_space<smem>>) -> (i32, i32) {
    %c0_i32 = arith.constant 0 : i32
    %c0_i32_0 = arith.constant 0 : i32
    %c0_i32_1 = arith.constant 0 : i32
    return %c0_i32, %c0_i32_0 : i32, i32
  }
  func.func @transform_4(%arg0: i32, %arg1: memref<1xi32, #tpu.memory_space<smem>>) -> (i32, i32) {
    %c0_i32 = arith.constant 0 : i32
    %c0_i32_0 = arith.constant 0 : i32
    %c0_i32_1 = arith.constant 0 : i32
    return %c0_i32, %c0_i32_0 : i32, i32
  }
  func.func @transform_5(%arg0: i32, %arg1: memref<1xi32, #tpu.memory_space<smem>>) -> (i32, i32) {
    %c0_i32 = arith.constant 0 : i32
    %c0_i32_0 = arith.constant 0 : i32
    return %arg0, %c0_i32 : i32, i32
  }
}

</mosaic_0001>

<llo_original>
// kernel: tpu_custom_call.1
$region0: #{tpu_custom_call.1}
  #allocation0 [shape = 'u32[]', space=smem, size = 0x4, offset = 0x4, fixed_abs, tag = 'smem constant byte address 0x4 - core index']
  #allocation1 [shape = 'u32[144,128]{1,0:T(1,128)}', space=vmem, size = 0x12000, scoped, tag = 'internal scratch']
  #allocation2 [shape = 's32[1]{0}', space=sflag, size = 0x4, scoped, tag = 'scoped memory for tpu_custom_call.1']
  #allocation3 [shape = 's32[1]{0:T(128)S(6)}', space=smem, size = 0x200, scoped, tag = 'prefetched SMEM operand 0']
  %s0 = inlined_call_operand.<no memory space> [shape: s32[1], index: 0, kind: input, shape index: {}]
  %s1 = inlined_call_operand.hbm [shape: f32[32,896], index: 1, kind: input, shape index: {}]
  %s2 = inlined_call_operand.hbm [shape: bf16[896,256], index: 2, kind: input, shape index: {}]
  %s3 = inlined_call_operand.vmem [shape: f32[1,256], index: 3, kind: input, shape index: {}]
  %s4 = inlined_call_operand.hbm [shape: bf16[256,128], index: 4, kind: input, shape index: {}]
  %s5 = inlined_call_operand.vmem [shape: f32[1,128], index: 5, kind: input, shape index: {}]
  %s6 = inlined_call_operand.hbm [shape: f32[32,128], index: 6, kind: output, shape index: {}]
  %s7 = sld [smem:[#allocation0]]
  $region42: #{tpu_custom_call.1} parent=0
    _
  %s9 = ssub.s32 1, %s7
  %s10 = scalar_select 0, %s9, %s7
  %11 = sst [smem:[#allocation3]] %s0
  $region1: #{tpu_custom_call.1} parent=0
    #allocation4 [shape = 'u8[114688]{0}', space=vmem, size = 0x1c000, scoped, tag = 'input window, operand 1, single buffered']
    #allocation5 [shape = 's32[1]{0}', space=sflag, size = 0x4, scoped, tag = 'scoped memory for tpu_custom_call.1']
    #allocation6 [shape = 's32[1]{0}', space=sflag, size = 0x4, scoped, tag = 'scoped memory for tpu_custom_call.1']
    #allocation7 [shape = 'u8[458752]{0}', space=vmem, size = 0x70000, scoped, tag = 'input window, operand 2, single buffered']
    #allocation8 [shape = 's32[1]{0}', space=sflag, size = 0x4, scoped, tag = 'scoped memory for tpu_custom_call.1']
    #allocation9 [shape = 'u8[65536]{0}', space=vmem, size = 0x10000, scoped, tag = 'input window, operand 4, single buffered']
    #allocation10 [shape = 'u8[16384]{0}', space=vmem, size = 0x4000, scoped, tag = 'output window, operand 0, single buffered']
    %12 = vsyncpa [#allocation5], 0
    %13 = vsyncpa [#allocation8], 0
    %14 = vsyncpa [#allocation6], 0
    // Predicated region
    $region2: #{tpu_custom_call.1} parent=1 // pred_check
      _
    $region3: #{tpu_custom_call.1} parent=1 // pred_check_branch
      %16 = sbr.rel (0) target = $region5
    $region4: #{tpu_custom_call.1} parent=1 // pred_region
      %s18 = ssub.s32 3584, 3584
      %19 = vsyncadd [#allocation5], %s18
      %s20 = sshll.u32 [#allocation4], 4
      %s21 = int_to_ptr.vmem [resolvable:$true] %s20
      %26 = dma.hbm_to_vmem [thread:$0]  %s1, 3584, %s21, [#allocation5], 896, 896, 56
    $region5: #{tpu_custom_call.1} parent=1 // pred_fallthru
      _
    // Predicated region
    $region6: #{tpu_custom_call.1} parent=1 // pred_check
      _
    $region7: #{tpu_custom_call.1} parent=1 // pred_check_branch
      %28 = sbr.rel (0) target = $region9
    $region8: #{tpu_custom_call.1} parent=1 // pred_region
      %s30 = ssub.s32 14336, 14336
      %31 = vsyncadd [#allocation8], %s30
      %s32 = sshll.u32 [#allocation7], 4
      %s33 = int_to_ptr.vmem [resolvable:$true] %s32
      %38 = dma.hbm_to_vmem [thread:$0]  %s2, 14336, %s33, [#allocation8], 128, 128, 8
    $region9: #{tpu_custom_call.1} parent=1 // pred_fallthru
      _
    // Predicated region
    $region10: #{tpu_custom_call.1} parent=1 // pred_check
      _
    $region11: #{tpu_custom_call.1} parent=1 // pred_check_branch
      %40 = sbr.rel (0) target = $region13
    $region12: #{tpu_custom_call.1} parent=1 // pred_region
      _
    $region13: #{tpu_custom_call.1} parent=1 // pred_fallthru
      _
    // Predicated region
    $region14: #{tpu_custom_call.1} parent=1 // pred_check
      _
    $region15: #{tpu_custom_call.1} parent=1 // pred_check_branch
      %42 = sbr.rel (0) target = $region17
    $region16: #{tpu_custom_call.1} parent=1 // pred_region
      %s44 = ssub.s32 2048, 2048
      %45 = vsyncadd [#allocation8], %s44
      %s46 = sshll.u32 [#allocation9], 4
      %s47 = int_to_ptr.vmem [resolvable:$true] %s46
      %52 = dma.hbm_to_vmem [thread:$0]  %s4, 2048, %s47, [#allocation8], 64, 64, 4
    $region17: #{tpu_custom_call.1} parent=1 // pred_fallthru
      _
    // Predicated region
    $region18: #{tpu_custom_call.1} parent=1 // pred_check
      _
    $region19: #{tpu_custom_call.1} parent=1 // pred_check_branch
      %54 = sbr.rel (0) target = $region21
    $region20: #{tpu_custom_call.1} parent=1 // pred_region
      _
    $region21: #{tpu_custom_call.1} parent=1 // pred_fallthru
      _
    // Predicated region
    $region22: #{tpu_custom_call.1} parent=1 // pred_check
      _
    $region23: #{tpu_custom_call.1} parent=1 // pred_check_branch
      %56 = sbr.rel (0) target = $region25
    $region24: #{tpu_custom_call.1} parent=1 // pred_region
      %57 = dma.done [#allocation5], 3584
    $region25: #{tpu_custom_call.1} parent=1 // pred_fallthru
      _
    // Predicated region
    $region26: #{tpu_custom_call.1} parent=1 // pred_check
      _
    $region27: #{tpu_custom_call.1} parent=1 // pred_check_branch
      %59 = sbr.rel (0) target = $region29
    $region28: #{tpu_custom_call.1} parent=1 // pred_region
      %60 = dma.done [#allocation8], 14336
    $region29: #{tpu_custom_call.1} parent=1 // pred_fallthru
      _
    // Predicated region
    $region30: #{tpu_custom_call.1} parent=1 // pred_check
      _
    $region31: #{tpu_custom_call.1} parent=1 // pred_check_branch
      %62 = sbr.rel (0) target = $region33
    $region32: #{tpu_custom_call.1} parent=1 // pred_region
      %63 = dma.done [#allocation8], 2048
    $region33: #{tpu_custom_call.1} parent=1 // pred_fallthru
      _
    %v65 = vld [vmem:[#allocation4] sm:$0xff]
    %v66 = vld [vmem:[#allocation4 + $0x8] sm:$0xff]
    %v67 = vld [vmem:[#allocation4 + $0x10] sm:$0xff]
    %v68 = vld [vmem:[#allocation4 + $0x18] sm:$0xff]
    %v69 = vld [vmem:[#allocation4 + $0x20] sm:$0xff]
    %v70 = vld [vmem:[#allocation4 + $0x28] sm:$0xff]
    %v71 = vld [vmem:[#allocation4 + $0x30] sm:$0xff]
    %v72 = vld [vmem:[#allocation4 + $0x38] sm:$0xff]
    %v73 = vld [vmem:[#allocation4 + $0x40] sm:$0xff]
    %v74 = vld [vmem:[#allocation4 + $0x48] sm:$0xff]
    %v75 = vld [vmem:[#allocation4 + $0x50] sm:$0xff]
    %v76 = vld [vmem:[#allocation4 + $0x58] sm:$0xff]
    %v77 = vld [vmem:[#allocation4 + $0x60] sm:$0xff]
    %v78 = vld [vmem:[#allocation4 + $0x68] sm:$0xff]
    %v79 = vld [vmem:[#allocation4 + $0x70] sm:$0xff]
    %v80 = vld [vmem:[#allocation4 + $0x78] sm:$0xff]
    %v81 = vld [vmem:[#allocation4 + $0x80] sm:$0xff]
    %v82 = vld [vmem:[#allocation4 + $0x88] sm:$0xff]
    %v83 = vld [vmem:[#allocation4 + $0x90] sm:$0xff]
    %v84 = vld [vmem:[#allocation4 + $0x98] sm:$0xff]
    %v85 = vld [vmem:[#allocation4 + $0xa0] sm:$0xff]
    %v86 = vld [vmem:[#allocation4 + $0xa8] sm:$0xff]
    %v87 = vld [vmem:[#allocation4 + $0xb0] sm:$0xff]
    %v88 = vld [vmem:[#allocation4 + $0xb8] sm:$0xff]
    %v89 = vld [vmem:[#allocation4 + $0xc0] sm:$0xff]
    %v90 = vld [vmem:[#allocation4 + $0xc8] sm:$0xff]
    %v91 = vld [vmem:[#allocation4 + $0xd0] sm:$0xff]
    %v92 = vld [vmem:[#allocation4 + $0xd8] sm:$0xff]
    %v93 = vpack.c.bf16 %v72, %v65
    %v94 = vpack.c.bf16 %v73, %v66
    %v95 = vpack.c.bf16 %v74, %v67
    %v96 = vpack.c.bf16 %v75, %v68
    %v97 = vpack.c.bf16 %v76, %v69
    %v98 = vpack.c.bf16 %v77, %v70
    %v99 = vpack.c.bf16 %v78, %v71
    %v100 = vpack.c.bf16 %v86, %v79
    %v101 = vpack.c.bf16 %v87, %v80
    %v102 = vpack.c.bf16 %v88, %v81
    %v103 = vpack.c.bf16 %v89, %v82
    %v104 = vpack.c.bf16 %v90, %v83
    %v105 = vpack.c.bf16 %v91, %v84
    %v106 = vpack.c.bf16 %v92, %v85
    %v107 = vld [vmem:[#allocation7] sm:$0xff]
    %v108 = vld [vmem:[#allocation7 + $0x8] sm:$0xff]
    %v109 = vld [vmem:[#allocation7 + $0x10] sm:$0xff]
    %v110 = vld [vmem:[#allocation7 + $0x18] sm:$0xff]
    %v111 = vld [vmem:[#allocation7 + $0x20] sm:$0xff]
    %v112 = vld [vmem:[#allocation7 + $0x28] sm:$0xff]
    %v113 = vld [vmem:[#allocation7 + $0x30] sm:$0xff]
    %v114 = vld [vmem:[#allocation7 + $0x38] sm:$0xff]
    %v115 = vld [vmem:[#allocation7 + $0x40] sm:$0xff]
    %v116 = vld [vmem:[#allocation7 + $0x48] sm:$0xff]
    %v117 = vld [vmem:[#allocation7 + $0x50] sm:$0xff]
    %v118 = vld [vmem:[#allocation7 + $0x58] sm:$0xff]
    %v119 = vld [vmem:[#allocation7 + $0x60] sm:$0xff]
    %v120 = vld [vmem:[#allocation7 + $0x68] sm:$0xff]
    %v121 = vld [vmem:[#allocation7 + $0x70] sm:$0xff]
    %v122 = vld [vmem:[#allocation7 + $0x78] sm:$0xff]
    %v123 = vld [vmem:[#allocation7 + $0x80] sm:$0xff]
    %v124 = vld [vmem:[#allocation7 + $0x88] sm:$0xff]
    %v125 = vld [vmem:[#allocation7 + $0x90] sm:$0xff]
    %v126 = vld [vmem:[#allocation7 + $0x98] sm:$0xff]
    %v127 = vld [vmem:[#allocation7 + $0xa0] sm:$0xff]
    %v128 = vld [vmem:[#allocation7 + $0xa8] sm:$0xff]
    %v129 = vld [vmem:[#allocation7 + $0xb0] sm:$0xff]
    %v130 = vld [vmem:[#allocation7 + $0xb8] sm:$0xff]
    %v131 = vld [vmem:[#allocation7 + $0xc0] sm:$0xff]
    %v132 = vld [vmem:[#allocation7 + $0xc8] sm:$0xff]
    %v133 = vld [vmem:[#allocation7 + $0xd0] sm:$0xff]
    %v134 = vld [vmem:[#allocation7 + $0xd8] sm:$0xff]
    %v135 = vld [vmem:[#allocation7 + $0xe0] sm:$0xff]
    %v136 = vld [vmem:[#allocation7 + $0xe8] sm:$0xff]
    %v137 = vld [vmem:[#allocation7 + $0xf0] sm:$0xff]
    %v138 = vld [vmem:[#allocation7 + $0xf8] sm:$0xff]
    %v139 = vld [vmem:[#allocation7 + $0x100] sm:$0xff]
    %v140 = vld [vmem:[#allocation7 + $0x108] sm:$0xff]
    %v141 = vld [vmem:[#allocation7 + $0x110] sm:$0xff]
    %v142 = vld [vmem:[#allocation7 + $0x118] sm:$0xff]
    %v143 = vld [vmem:[#allocation7 + $0x120] sm:$0xff]
    %v144 = vld [vmem:[#allocation7 + $0x128] sm:$0xff]
    %v145 = vld [vmem:[#allocation7 + $0x130] sm:$0xff]
    %v146 = vld [vmem:[#allocation7 + $0x138] sm:$0xff]
    %v147 = vld [vmem:[#allocation7 + $0x140] sm:$0xff]
    %v148 = vld [vmem:[#allocation7 + $0x148] sm:$0xff]
    %v149 = vld [vmem:[#allocation7 + $0x150] sm:$0xff]
    %v150 = vld [vmem:[#allocation7 + $0x158] sm:$0xff]
    %v151 = vld [vmem:[#allocation7 + $0x160] sm:$0xff]
    %v152 = vld [vmem:[#allocation7 + $0x168] sm:$0xff]
    %v153 = vld [vmem:[#allocation7 + $0x170] sm:$0xff]
    %v154 = vld [vmem:[#allocation7 + $0x178] sm:$0xff]
    %v155 = vld [vmem:[#allocation7 + $0x180] sm:$0xff]
    %v156 = vld [vmem:[#allocation7 + $0x188] sm:$0xff]
    %v157 = vld [vmem:[#allocation7 + $0x190] sm:$0xff]
    %v158 = vld [vmem:[#allocation7 + $0x198] sm:$0xff]
    %v159 = vld [vmem:[#allocation7 + $0x1a0] sm:$0xff]
    %v160 = vld [vmem:[#allocation7 + $0x1a8] sm:$0xff]
    %v161 = vld [vmem:[#allocation7 + $0x1b0] sm:$0xff]
    %v162 = vld [vmem:[#allocation7 + $0x1b8] sm:$0xff]
    %v163 = vld [vmem:[#allocation7 + $0x1c0] sm:$0xff]
    %v164 = vld [vmem:[#allocation7 + $0x1c8] sm:$0xff]
    %v165 = vld [vmem:[#allocation7 + $0x1d0] sm:$0xff]
    %v166 = vld [vmem:[#allocation7 + $0x1d8] sm:$0xff]
    %v167 = vld [vmem:[#allocation7 + $0x1e0] sm:$0xff]
    %v168 = vld [vmem:[#allocation7 + $0x1e8] sm:$0xff]
    %v169 = vld [vmem:[#allocation7 + $0x1f0] sm:$0xff]
    %v170 = vld [vmem:[#allocation7 + $0x1f8] sm:$0xff]
    %v171 = vld [vmem:[#allocation7 + $0x200] sm:$0xff]
    %v172 = vld [vmem:[#allocation7 + $0x208] sm:$0xff]
    %v173 = vld [vmem:[#allocation7 + $0x210] sm:$0xff]
    %v174 = vld [vmem:[#allocation7 + $0x218] sm:$0xff]
    %v175 = vld [vmem:[#allocation7 + $0x220] sm:$0xff]
    %v176 = vld [vmem:[#allocation7 + $0x228] sm:$0xff]
    %v177 = vld [vmem:[#allocation7 + $0x230] sm:$0xff]
    %v178 = vld [vmem:[#allocation7 + $0x238] sm:$0xff]
    %v179 = vld [vmem:[#allocation7 + $0x240] sm:$0xff]
    %v180 = vld [vmem:[#allocation7 + $0x248] sm:$0xff]
    %v181 = vld [vmem:[#allocation7 + $0x250] sm:$0xff]
    %v182 = vld [vmem:[#allocation7 + $0x258] sm:$0xff]
    %v183 = vld [vmem:[#allocation7 + $0x260] sm:$0xff]
    %v184 = vld [vmem:[#allocation7 + $0x268] sm:$0xff]
    %v185 = vld [vmem:[#allocation7 + $0x270] sm:$0xff]
    %v186 = vld [vmem:[#allocation7 + $0x278] sm:$0xff]
    %v187 = vld [vmem:[#allocation7 + $0x280] sm:$0xff]
    %v188 = vld [vmem:[#allocation7 + $0x288] sm:$0xff]
    %v189 = vld [vmem:[#allocation7 + $0x290] sm:$0xff]
    %v190 = vld [vmem:[#allocation7 + $0x298] sm:$0xff]
    %v191 = vld [vmem:[#allocation7 + $0x2a0] sm:$0xff]
    %v192 = vld [vmem:[#allocation7 + $0x2a8] sm:$0xff]
    %v193 = vld [vmem:[#allocation7 + $0x2b0] sm:$0xff]
    %v194 = vld [vmem:[#allocation7 + $0x2b8] sm:$0xff]
    %v195 = vld [vmem:[#allocation7 + $0x2c0] sm:$0xff]
    %v196 = vld [vmem:[#allocation7 + $0x2c8] sm:$0xff]
    %v197 = vld [vmem:[#allocation7 + $0x2d0] sm:$0xff]
    %v198 = vld [vmem:[#allocation7 + $0x2d8] sm:$0xff]
    %v199 = vld [vmem:[#allocation7 + $0x2e0] sm:$0xff]
    %v200 = vld [vmem:[#allocation7 + $0x2e8] sm:$0xff]
    %v201 = vld [vmem:[#allocation7 + $0x2f0] sm:$0xff]
    %v202 = vld [vmem:[#allocation7 + $0x2f8] sm:$0xff]
    %v203 = vld [vmem:[#allocation7 + $0x300] sm:$0xff]
    %v204 = vld [vmem:[#allocation7 + $0x308] sm:$0xff]
    %v205 = vld [vmem:[#allocation7 + $0x310] sm:$0xff]
    %v206 = vld [vmem:[#allocation7 + $0x318] sm:$0xff]
    %v207 = vld [vmem:[#allocation7 + $0x320] sm:$0xff]
    %v208 = vld [vmem:[#allocation7 + $0x328] sm:$0xff]
    %v209 = vld [vmem:[#allocation7 + $0x330] sm:$0xff]
    %v210 = vld [vmem:[#allocation7 + $0x338] sm:$0xff]
    %v211 = vld [vmem:[#allocation7 + $0x340] sm:$0xff]
    %v212 = vld [vmem:[#allocation7 + $0x348] sm:$0xff]
    %v213 = vld [vmem:[#allocation7 + $0x350] sm:$0xff]
    %v214 = vld [vmem:[#allocation7 + $0x358] sm:$0xff]
    %v215 = vld [vmem:[#allocation7 + $0x360] sm:$0xff]
    %v216 = vld [vmem:[#allocation7 + $0x368] sm:$0xff]
    %v217 = vld [vmem:[#allocation7 + $0x370] sm:$0xff]
    %v218 = vld [vmem:[#allocation7 + $0x378] sm:$0xff]
    %v219 = vld [vmem:[%s3] sm:$0x3]
    %v221 = vlaneseq
    %v222 = vshrl.u32 %v221, 7
    %v223 = vsub.s32 0, %v222
    %v224 = vrot.slane %v219, %v223
    %v225 = vlaneseq
    %v226 = vshrl.u32 %v225, 7
    %v227 = vsub.s32 1, %v226
    %v228 = vrot.slane %v219, %v227
    %v343 = vunpack.c.l.b16 %v107
    %v344 = vunpack.c.h.b16 %v107
    %v345 = vunpack.c.l.b16 %v108
    %v346 = vunpack.c.h.b16 %v108
    %v347 = vunpack.c.l.b16 %v109
    %v348 = vunpack.c.h.b16 %v109
    %v349 = vunpack.c.l.b16 %v110
    %v350 = vunpack.c.h.b16 %v110
    %v351 = vunpack.c.l.b16 %v111
    %v352 = vunpack.c.h.b16 %v111
    %v353 = vunpack.c.l.b16 %v112
    %v354 = vunpack.c.h.b16 %v112
    %v355 = vunpack.c.l.b16 %v113
    %v356 = vunpack.c.h.b16 %v113
    %v357 = vunpack.c.l.b16 %v114
    %v358 = vunpack.c.h.b16 %v114
    %v359 = vunpack.c.l.b16 %v115
    %v360 = vunpack.c.h.b16 %v115
    %v361 = vunpack.c.l.b16 %v116
    %v362 = vunpack.c.h.b16 %v116
    %v363 = vunpack.c.l.b16 %v117
    %v364 = vunpack.c.h.b16 %v117
    %v365 = vunpack.c.l.b16 %v118
    %v366 = vunpack.c.h.b16 %v118
    %v367 = vunpack.c.l.b16 %v119
    %v368 = vunpack.c.h.b16 %v119
    %v369 = vunpack.c.l.b16 %v120
    %v370 = vunpack.c.h.b16 %v120
    %v371 = vunpack.c.l.b16 %v121
    %v372 = vunpack.c.h.b16 %v121
    %v373 = vunpack.c.l.b16 %v122
    %v374 = vunpack.c.h.b16 %v122
    %v375 = vunpack.c.l.b16 %v123
    %v376 = vunpack.c.h.b16 %v123
    %v377 = vunpack.c.l.b16 %v124
    %v378 = vunpack.c.h.b16 %v124
    %v379 = vunpack.c.l.b16 %v125
    %v380 = vunpack.c.h.b16 %v125
    %v381 = vunpack.c.l.b16 %v126
    %v382 = vunpack.c.h.b16 %v126
    %v383 = vunpack.c.l.b16 %v127
    %v384 = vunpack.c.h.b16 %v127
    %v385 = vunpack.c.l.b16 %v128
    %v386 = vunpack.c.h.b16 %v128
    %v387 = vunpack.c.l.b16 %v129
    %v388 = vunpack.c.h.b16 %v129
    %v389 = vunpack.c.l.b16 %v130
    %v390 = vunpack.c.h.b16 %v130
    %v391 = vunpack.c.l.b16 %v131
    %v392 = vunpack.c.h.b16 %v131
    %v393 = vunpack.c.l.b16 %v132
    %v394 = vunpack.c.h.b16 %v132
    %v395 = vunpack.c.l.b16 %v133
    %v396 = vunpack.c.h.b16 %v133
    %v397 = vunpack.c.l.b16 %v134
    %v398 = vunpack.c.h.b16 %v134
    %v399 = vunpack.c.l.b16 %v135
    %v400 = vunpack.c.h.b16 %v135
    %v401 = vunpack.c.l.b16 %v136
    %v402 = vunpack.c.h.b16 %v136
    %v403 = vunpack.c.l.b16 %v137
    %v404 = vunpack.c.h.b16 %v137
    %v405 = vunpack.c.l.b16 %v138
    %v406 = vunpack.c.h.b16 %v138
    %v407 = vunpack.c.l.b16 %v139
    %v408 = vunpack.c.h.b16 %v139
    %v409 = vunpack.c.l.b16 %v140
    %v410 = vunpack.c.h.b16 %v140
    %v411 = vunpack.c.l.b16 %v141
    %v412 = vunpack.c.h.b16 %v141
    %v413 = vunpack.c.l.b16 %v142
    %v414 = vunpack.c.h.b16 %v142
    %v415 = vunpack.c.l.b16 %v143
    %v416 = vunpack.c.h.b16 %v143
    %v417 = vunpack.c.l.b16 %v144
    %v418 = vunpack.c.h.b16 %v144
    %v419 = vunpack.c.l.b16 %v145
    %v420 = vunpack.c.h.b16 %v145
    %v421 = vunpack.c.l.b16 %v146
    %v422 = vunpack.c.h.b16 %v146
    %v423 = vunpack.c.l.b16 %v147
    %v424 = vunpack.c.h.b16 %v147
    %v425 = vunpack.c.l.b16 %v148
    %v426 = vunpack.c.h.b16 %v148
    %v427 = vunpack.c.l.b16 %v149
    %v428 = vunpack.c.h.b16 %v149
    %v429 = vunpack.c.l.b16 %v150
    %v430 = vunpack.c.h.b16 %v150
    %v431 = vunpack.c.l.b16 %v151
    %v432 = vunpack.c.h.b16 %v151
    %v433 = vunpack.c.l.b16 %v152
    %v434 = vunpack.c.h.b16 %v152
    %v435 = vunpack.c.l.b16 %v153
    %v436 = vunpack.c.h.b16 %v153
    %v437 = vunpack.c.l.b16 %v154
    %v438 = vunpack.c.h.b16 %v154
    %v439 = vunpack.c.l.b16 %v155
    %v440 = vunpack.c.h.b16 %v155
    %v441 = vunpack.c.l.b16 %v156
    %v442 = vunpack.c.h.b16 %v156
    %v443 = vunpack.c.l.b16 %v157
    %v444 = vunpack.c.h.b16 %v157
    %v445 = vunpack.c.l.b16 %v158
    %v446 = vunpack.c.h.b16 %v158
    %v447 = vunpack.c.l.b16 %v159
    %v448 = vunpack.c.h.b16 %v159
    %v449 = vunpack.c.l.b16 %v160
    %v450 = vunpack.c.h.b16 %v160
    %v451 = vunpack.c.l.b16 %v161
    %v452 = vunpack.c.h.b16 %v161
    %v453 = vunpack.c.l.b16 %v162
    %v454 = vunpack.c.h.b16 %v162
    %v455 = vunpack.c.l.b16 %v163
    %v456 = vunpack.c.h.b16 %v163
    %v457 = vunpack.c.l.b16 %v164
    %v458 = vunpack.c.h.b16 %v164
    %v459 = vunpack.c.l.b16 %v165
    %v460 = vunpack.c.h.b16 %v165
    %v461 = vunpack.c.l.b16 %v166
    %v462 = vunpack.c.h.b16 %v166
    %v463 = vunpack.c.l.b16 %v167
    %v464 = vunpack.c.h.b16 %v167
    %v465 = vunpack.c.l.b16 %v168
    %v466 = vunpack.c.h.b16 %v168
    %v467 = vunpack.c.l.b16 %v169
    %v468 = vunpack.c.h.b16 %v169
    %v469 = vunpack.c.l.b16 %v170
    %v470 = vunpack.c.h.b16 %v170
    %v471 = vunpack.c.l.b16 %v171
    %v472 = vunpack.c.h.b16 %v171
    %v473 = vunpack.c.l.b16 %v172
    %v474 = vunpack.c.h.b16 %v172
    %v475 = vunpack.c.l.b16 %v173
    %v476 = vunpack.c.h.b16 %v173
    %v477 = vunpack.c.l.b16 %v174
    %v478 = vunpack.c.h.b16 %v174
    %v479 = vunpack.c.l.b16 %v175
    %v480 = vunpack.c.h.b16 %v175
    %v481 = vunpack.c.l.b16 %v176
    %v482 = vunpack.c.h.b16 %v176
    %v483 = vunpack.c.l.b16 %v177
    %v484 = vunpack.c.h.b16 %v177
    %v485 = vunpack.c.l.b16 %v178
    %v486 = vunpack.c.h.b16 %v178
    %v487 = vunpack.c.l.b16 %v179
    %v488 = vunpack.c.h.b16 %v179
    %v489 = vunpack.c.l.b16 %v180
    %v490 = vunpack.c.h.b16 %v180
    %v491 = vunpack.c.l.b16 %v181
    %v492 = vunpack.c.h.b16 %v181
    %v493 = vunpack.c.l.b16 %v182
    %v494 = vunpack.c.h.b16 %v182
    %v495 = vunpack.c.l.b16 %v183
    %v496 = vunpack.c.h.b16 %v183
    %v497 = vunpack.c.l.b16 %v184
    %v498 = vunpack.c.h.b16 %v184
    %v499 = vunpack.c.l.b16 %v185
    %v500 = vunpack.c.h.b16 %v185
    %v501 = vunpack.c.l.b16 %v186
    %v502 = vunpack.c.h.b16 %v186
    %v503 = vunpack.c.l.b16 %v187
    %v504 = vunpack.c.h.b16 %v187
    %v505 = vunpack.c.l.b16 %v188
    %v506 = vunpack.c.h.b16 %v188
    %v507 = vunpack.c.l.b16 %v189
    %v508 = vunpack.c.h.b16 %v189
    %v509 = vunpack.c.l.b16 %v190
    %v510 = vunpack.c.h.b16 %v190
    %v511 = vunpack.c.l.b16 %v191
    %v512 = vunpack.c.h.b16 %v191
    %v513 = vunpack.c.l.b16 %v192
    %v514 = vunpack.c.h.b16 %v192
    %v515 = vunpack.c.l.b16 %v193
    %v516 = vunpack.c.h.b16 %v193
    %v517 = vunpack.c.l.b16 %v194
    %v518 = vunpack.c.h.b16 %v194
    %v519 = vunpack.c.l.b16 %v195
    %v520 = vunpack.c.h.b16 %v195
    %v521 = vunpack.c.l.b16 %v196
    %v522 = vunpack.c.h.b16 %v196
    %v523 = vunpack.c.l.b16 %v197
    %v524 = vunpack.c.h.b16 %v197
    %v525 = vunpack.c.l.b16 %v198
    %v526 = vunpack.c.h.b16 %v198
    %v527 = vunpack.c.l.b16 %v199
    %v528 = vunpack.c.h.b16 %v199
    %v529 = vunpack.c.l.b16 %v200
    %v530 = vunpack.c.h.b16 %v200
    %v531 = vunpack.c.l.b16 %v201
    %v532 = vunpack.c.h.b16 %v201
    %v533 = vunpack.c.l.b16 %v202
    %v534 = vunpack.c.h.b16 %v202
    %v535 = vunpack.c.l.b16 %v203
    %v536 = vunpack.c.h.b16 %v203
    %v537 = vunpack.c.l.b16 %v204
    %v538 = vunpack.c.h.b16 %v204
    %v539 = vunpack.c.l.b16 %v205
    %v540 = vunpack.c.h.b16 %v205
    %v541 = vunpack.c.l.b16 %v206
    %v542 = vunpack.c.h.b16 %v206
    %v543 = vunpack.c.l.b16 %v207
    %v544 = vunpack.c.h.b16 %v207
    %v545 = vunpack.c.l.b16 %v208
    %v546 = vunpack.c.h.b16 %v208
    %v547 = vunpack.c.l.b16 %v209
    %v548 = vunpack.c.h.b16 %v209
    %v549 = vunpack.c.l.b16 %v210
    %v550 = vunpack.c.h.b16 %v210
    %v551 = vunpack.c.l.b16 %v211
    %v552 = vunpack.c.h.b16 %v211
    %v553 = vunpack.c.l.b16 %v212
    %v554 = vunpack.c.h.b16 %v212
    %v555 = vunpack.c.l.b16 %v213
    %v556 = vunpack.c.h.b16 %v213
    %v557 = vunpack.c.l.b16 %v214
    %v558 = vunpack.c.h.b16 %v214
    %v559 = vunpack.c.l.b16 %v215
    %v560 = vunpack.c.h.b16 %v215
    %v561 = vunpack.c.l.b16 %v216
    %v562 = vunpack.c.h.b16 %v216
    %v563 = vunpack.c.l.b16 %v217
    %v564 = vunpack.c.h.b16 %v217
    %v565 = vunpack.c.l.b16 %v218
    %v566 = vunpack.c.h.b16 %v218
    %v567 = vpack.c.b16 %v345, %v343
    %v568 = vpack.c.b16 %v346, %v344
    %v569 = vpack.c.b16 %v349, %v347
    %v570 = vpack.c.b16 %v350, %v348
    %v571 = vpack.c.b16 %v353, %v351
    %v572 = vpack.c.b16 %v354, %v352
    %v573 = vpack.c.b16 %v357, %v355
    %v574 = vpack.c.b16 %v358, %v356
    %v575 = vpack.c.b16 %v361, %v359
    %v576 = vpack.c.b16 %v362, %v360
    %v577 = vpack.c.b16 %v365, %v363
    %v578 = vpack.c.b16 %v366, %v364
    %v579 = vpack.c.b16 %v369, %v367
    %v580 = vpack.c.b16 %v370, %v368
    %v581 = vpack.c.b16 %v373, %v371
    %v582 = vpack.c.b16 %v374, %v372
    %v583 = vpack.c.b16 %v377, %v375
    %v584 = vpack.c.b16 %v378, %v376
    %v585 = vpack.c.b16 %v381, %v379
    %v586 = vpack.c.b16 %v382, %v380
    %v587 = vpack.c.b16 %v385, %v383
    %v588 = vpack.c.b16 %v386, %v384
    %v589 = vpack.c.b16 %v389, %v387
    %v590 = vpack.c.b16 %v390, %v388
    %v591 = vpack.c.b16 %v393, %v391
    %v592 = vpack.c.b16 %v394, %v392
    %v593 = vpack.c.b16 %v397, %v395
    %v594 = vpack.c.b16 %v398, %v396
    %v595 = vpack.c.b16 %v401, %v399
    %v596 = vpack.c.b16 %v402, %v400
    %v597 = vpack.c.b16 %v405, %v403
    %v598 = vpack.c.b16 %v406, %v404
    %v599 = vpack.c.b16 %v409, %v407
    %v600 = vpack.c.b16 %v410, %v408
    %v601 = vpack.c.b16 %v413, %v411
    %v602 = vpack.c.b16 %v414, %v412
    %v603 = vpack.c.b16 %v417, %v415
    %v604 = vpack.c.b16 %v418, %v416
    %v605 = vpack.c.b16 %v421, %v419
    %v606 = vpack.c.b16 %v422, %v420
    %v607 = vpack.c.b16 %v425, %v423
    %v608 = vpack.c.b16 %v426, %v424
    %v609 = vpack.c.b16 %v429, %v427
    %v610 = vpack.c.b16 %v430, %v428
    %v611 = vpack.c.b16 %v433, %v431
    %v612 = vpack.c.b16 %v434, %v432
    %v613 = vpack.c.b16 %v437, %v435
    %v614 = vpack.c.b16 %v438, %v436
    %v615 = vpack.c.b16 %v441, %v439
    %v616 = vpack.c.b16 %v442, %v440
    %v617 = vpack.c.b16 %v445, %v443
    %v618 = vpack.c.b16 %v446, %v444
    %v619 = vpack.c.b16 %v449, %v447
    %v620 = vpack.c.b16 %v450, %v448
    %v621 = vpack.c.b16 %v453, %v451
    %v622 = vpack.c.b16 %v454, %v452
    %v623 = vpack.c.b16 %v457, %v455
    %v624 = vpack.c.b16 %v458, %v456
    %v625 = vpack.c.b16 %v461, %v459
    %v626 = vpack.c.b16 %v462, %v460
    %v627 = vpack.c.b16 %v465, %v463
    %v628 = vpack.c.b16 %v466, %v464
    %v629 = vpack.c.b16 %v469, %v467
    %v630 = vpack.c.b16 %v470, %v468
    %v631 = vpack.c.b16 %v473, %v471
    %v632 = vpack.c.b16 %v474, %v472
    %v633 = vpack.c.b16 %v477, %v475
    %v634 = vpack.c.b16 %v478, %v476
    %v635 = vpack.c.b16 %v481, %v479
    %v636 = vpack.c.b16 %v482, %v480
    %v637 = vpack.c.b16 %v485, %v483
    %v638 = vpack.c.b16 %v486, %v484
    %v639 = vpack.c.b16 %v489, %v487
    %v640 = vpack.c.b16 %v490, %v488
    %v641 = vpack.c.b16 %v493, %v491
    %v642 = vpack.c.b16 %v494, %v492
    %v643 = vpack.c.b16 %v497, %v495
    %v644 = vpack.c.b16 %v498, %v496
    %v645 = vpack.c.b16 %v501, %v499
    %v646 = vpack.c.b16 %v502, %v500
    %v647 = vpack.c.b16 %v505, %v503
    %v648 = vpack.c.b16 %v506, %v504
    %v649 = vpack.c.b16 %v509, %v507
    %v650 = vpack.c.b16 %v510, %v508
    %v651 = vpack.c.b16 %v513, %v511
    %v652 = vpack.c.b16 %v514, %v512
    %v653 = vpack.c.b16 %v517, %v515
    %v654 = vpack.c.b16 %v518, %v516
    %v655 = vpack.c.b16 %v521, %v519
    %v656 = vpack.c.b16 %v522, %v520
    %v657 = vpack.c.b16 %v525, %v523
    %v658 = vpack.c.b16 %v526, %v524
    %v659 = vpack.c.b16 %v529, %v527
    %v660 = vpack.c.b16 %v530, %v528
    %v661 = vpack.c.b16 %v533, %v531
    %v662 = vpack.c.b16 %v534, %v532
    %v663 = vpack.c.b16 %v537, %v535
    %v664 = vpack.c.b16 %v538, %v536
    %v665 = vpack.c.b16 %v541, %v539
    %v666 = vpack.c.b16 %v542, %v540
    %v667 = vpack.c.b16 %v545, %v543
    %v668 = vpack.c.b16 %v546, %v544
    %v669 = vpack.c.b16 %v549, %v547
    %v670 = vpack.c.b16 %v550, %v548
    %v671 = vpack.c.b16 %v553, %v551
    %v672 = vpack.c.b16 %v554, %v552
    %v673 = vpack.c.b16 %v557, %v555
    %v674 = vpack.c.b16 %v558, %v556
    %v675 = vpack.c.b16 %v561, %v559
    %v676 = vpack.c.b16 %v562, %v560
    %v677 = vpack.c.b16 %v565, %v563
    %v678 = vpack.c.b16 %v566, %v564
    %791 = vmatprep.subr.bf16.mxu0 %v582
    %792 = vmatpush1.bf16.msra.mxu0 %v581
    %793 = vmatprep.subr.bf16.mxu0 %v580
    %794 = vmatpush1.bf16.msra.mxu0 %v579
    %795 = vmatprep.subr.bf16.mxu0 %v578
    %796 = vmatpush1.bf16.msra.mxu0 %v577
    %797 = vmatprep.subr.bf16.mxu0 %v576
    %798 = vmatpush1.bf16.msra.mxu0 %v575
    %799 = vmatprep.subr.bf16.mxu0 %v574
    %800 = vmatpush1.bf16.msra.mxu0 %v573
    %801 = vmatprep.subr.bf16.mxu0 %v572
    %802 = vmatpush1.bf16.msra.mxu0 %v571
    %803 = vmatprep.subr.bf16.mxu0 %v570
    %804 = vmatpush1.bf16.msra.mxu0 %v569
    %805 = vmatprep.subr.bf16.mxu0 %v568
    %806 = vmatpush1.bf16.msra.mxu0 %v567
    %807 = vmatprep.subr.bf16.mxu0 %v598
    %808 = vmatpush2.bf16.msra.mxu0 %v597
    %809 = vmatprep.subr.bf16.mxu0 %v596
    %810 = vmatpush2.bf16.msra.mxu0 %v595
    %811 = vmatprep.subr.bf16.mxu0 %v594
    %812 = vmatpush2.bf16.msra.mxu0 %v593
    %813 = vmatprep.subr.bf16.mxu0 %v592
    %814 = vmatpush2.bf16.msra.mxu0 %v591
    %815 = vmatprep.subr.bf16.mxu0 %v590
    %816 = vmatpush2.bf16.msra.mxu0 %v589
    %817 = vmatprep.subr.bf16.mxu0 %v588
    %818 = vmatpush2.bf16.msra.mxu0 %v587
    %819 = vmatprep.subr.bf16.mxu0 %v586
    %820 = vmatpush2.bf16.msra.mxu0 %v585
    %821 = vmatprep.subr.bf16.mxu0 %v584
    %822 = vmatpush2.bf16.msra.mxu0 %v583
    %823 = vmatprep.mubr.bf16.mxu0 %v94
    %824 = vmatmul.mubr.bf16.gmra.mxu0 %v93
    %v825 = vpop.f32.mrf.mxu0
    %v826 = vadd.f32 %v224, %v825
    %v827 = vpop.f32.mrf.mxu0
    %v828 = vadd.f32 %v228, %v827
    %v829 = vpop.f32.mrf.mxu0
    %v830 = vadd.f32 %v224, %v829
    %v831 = vpop.f32.mrf.mxu0
    %v832 = vadd.f32 %v228, %v831
    %833 = vmatprep.mubr.bf16.mxu0 %v101
    %834 = vmatmul.mubr.bf16.gmra.mxu0 %v100
    %v835 = vpop.f32.mrf.mxu0
    %v836 = vadd.f32 %v224, %v835
    %v837 = vpop.f32.mrf.mxu0
    %v838 = vadd.f32 %v228, %v837
    %v839 = vpop.f32.mrf.mxu0
    %v840 = vadd.f32 %v224, %v839
    %v841 = vpop.f32.mrf.mxu0
    %v842 = vadd.f32 %v228, %v841
    %843 = vdwg.mxu0
    %844 = vmatprep.subr.bf16.mxu0 %v614
    %845 = vmatpush1.bf16.msra.mxu0 %v613
    %846 = vmatprep.subr.bf16.mxu0 %v612
    %847 = vmatpush1.bf16.msra.mxu0 %v611
    %848 = vmatprep.subr.bf16.mxu0 %v610
    %849 = vmatpush1.bf16.msra.mxu0 %v609
    %850 = vmatprep.subr.bf16.mxu0 %v608
    %851 = vmatpush1.bf16.msra.mxu0 %v607
    %852 = vmatprep.subr.bf16.mxu0 %v606
    %853 = vmatpush1.bf16.msra.mxu0 %v605
    %854 = vmatprep.subr.bf16.mxu0 %v604
    %855 = vmatpush1.bf16.msra.mxu0 %v603
    %856 = vmatprep.subr.bf16.mxu0 %v602
    %857 = vmatpush1.bf16.msra.mxu0 %v601
    %858 = vmatprep.subr.bf16.mxu0 %v600
    %859 = vmatpush1.bf16.msra.mxu0 %v599
    %860 = vmatprep.subr.bf16.mxu0 %v630
    %861 = vmatpush2.bf16.msra.mxu0 %v629
    %862 = vmatprep.subr.bf16.mxu0 %v628
    %863 = vmatpush2.bf16.msra.mxu0 %v627
    %864 = vmatprep.subr.bf16.mxu0 %v626
    %865 = vmatpush2.bf16.msra.mxu0 %v625
    %866 = vmatprep.subr.bf16.mxu0 %v624
    %867 = vmatpush2.bf16.msra.mxu0 %v623
    %868 = vmatprep.subr.bf16.mxu0 %v622
    %869 = vmatpush2.bf16.msra.mxu0 %v621
    %870 = vmatprep.subr.bf16.mxu0 %v620
    %871 = vmatpush2.bf16.msra.mxu0 %v619
    %872 = vmatprep.subr.bf16.mxu0 %v618
    %873 = vmatpush2.bf16.msra.mxu0 %v617
    %874 = vmatprep.subr.bf16.mxu0 %v616
    %875 = vmatpush2.bf16.msra.mxu0 %v615
    %876 = vmatprep.mubr.bf16.mxu0 %v96
    %877 = vmatmul.mubr.bf16.gmra.mxu0 %v95
    %v878 = vpop.f32.mrf.mxu0
    %v879 = vadd.f32 %v826, %v878
    %v880 = vpop.f32.mrf.mxu0
    %v881 = vadd.f32 %v828, %v880
    %v882 = vpop.f32.mrf.mxu0
    %v883 = vadd.f32 %v830, %v882
    %v884 = vpop.f32.mrf.mxu0
    %v885 = vadd.f32 %v832, %v884
    %886 = vmatprep.mubr.bf16.mxu0 %v103
    %887 = vmatmul.mubr.bf16.gmra.mxu0 %v102
    %v888 = vpop.f32.mrf.mxu0
    %v889 = vadd.f32 %v836, %v888
    %v890 = vpop.f32.mrf.mxu0
    %v891 = vadd.f32 %v838, %v890
    %v892 = vpop.f32.mrf.mxu0
    %v893 = vadd.f32 %v840, %v892
    %v894 = vpop.f32.mrf.mxu0
    %v895 = vadd.f32 %v842, %v894
    %896 = vdwg.mxu0
    %897 = vmatprep.subr.bf16.mxu0 %v646
    %898 = vmatpush1.bf16.msra.mxu0 %v645
    %899 = vmatprep.subr.bf16.mxu0 %v644
    %900 = vmatpush1.bf16.msra.mxu0 %v643
    %901 = vmatprep.subr.bf16.mxu0 %v642
    %902 = vmatpush1.bf16.msra.mxu0 %v641
    %903 = vmatprep.subr.bf16.mxu0 %v640
    %904 = vmatpush1.bf16.msra.mxu0 %v639
    %905 = vmatprep.subr.bf16.mxu0 %v638
    %906 = vmatpush1.bf16.msra.mxu0 %v637
    %907 = vmatprep.subr.bf16.mxu0 %v636
    %908 = vmatpush1.bf16.msra.mxu0 %v635
    %909 = vmatprep.subr.bf16.mxu0 %v634
    %910 = vmatpush1.bf16.msra.mxu0 %v633
    %911 = vmatprep.subr.bf16.mxu0 %v632
    %912 = vmatpush1.bf16.msra.mxu0 %v631
    %913 = vmatprep.subr.bf16.mxu0 %v662
    %914 = vmatpush2.bf16.msra.mxu0 %v661
    %915 = vmatprep.subr.bf16.mxu0 %v660
    %916 = vmatpush2.bf16.msra.mxu0 %v659
    %917 = vmatprep.subr.bf16.mxu0 %v658
    %918 = vmatpush2.bf16.msra.mxu0 %v657
    %919 = vmatprep.subr.bf16.mxu0 %v656
    %920 = vmatpush2.bf16.msra.mxu0 %v655
    %921 = vmatprep.subr.bf16.mxu0 %v654
    %922 = vmatpush2.bf16.msra.mxu0 %v653
    %923 = vmatprep.subr.bf16.mxu0 %v652
    %924 = vmatpush2.bf16.msra.mxu0 %v651
    %925 = vmatprep.subr.bf16.mxu0 %v650
    %926 = vmatpush2.bf16.msra.mxu0 %v649
    %927 = vmatprep.subr.bf16.mxu0 %v648
    %928 = vmatpush2.bf16.msra.mxu0 %v647
    %929 = vmatprep.mubr.bf16.mxu0 %v98
    %930 = vmatmul.mubr.bf16.gmra.mxu0 %v97
    %v931 = vpop.f32.mrf.mxu0
    %v932 = vadd.f32 %v879, %v931
    %v933 = vpop.f32.mrf.mxu0
    %v934 = vadd.f32 %v881, %v933
    %v935 = vpop.f32.mrf.mxu0
    %v936 = vadd.f32 %v883, %v935
    %v937 = vpop.f32.mrf.mxu0
    %v938 = vadd.f32 %v885, %v937
    %939 = vmatprep.mubr.bf16.mxu0 %v105
    %940 = vmatmul.mubr.bf16.gmra.mxu0 %v104
    %v941 = vpop.f32.mrf.mxu0
    %v942 = vadd.f32 %v889, %v941
    %v943 = vpop.f32.mrf.mxu0
    %v944 = vadd.f32 %v891, %v943
    %v945 = vpop.f32.mrf.mxu0
    %v946 = vadd.f32 %v893, %v945
    %v947 = vpop.f32.mrf.mxu0
    %v948 = vadd.f32 %v895, %v947
    %949 = vdwg.mxu0
    %950 = vmatprep.subr.bf16.mxu0 %v678
    %951 = vmatpush1.bf16.msra.mxu0 %v677
    %952 = vmatprep.subr.bf16.mxu0 %v676
    %953 = vmatpush1.bf16.msra.mxu0 %v675
    %954 = vmatprep.subr.bf16.mxu0 %v674
    %955 = vmatpush1.bf16.msra.mxu0 %v673
    %956 = vmatprep.subr.bf16.mxu0 %v672
    %957 = vmatpush1.bf16.msra.mxu0 %v671
    %958 = vmatprep.subr.bf16.mxu0 %v670
    %959 = vmatpush1.bf16.msra.mxu0 %v669
    %960 = vmatprep.subr.bf16.mxu0 %v668
    %961 = vmatpush1.bf16.msra.mxu0 %v667
    %962 = vmatprep.subr.bf16.mxu0 %v666
    %963 = vmatpush1.bf16.msra.mxu0 %v665
    %964 = vmatprep.subr.bf16.mxu0 %v664
    %965 = vmatpush1.bf16.msra.mxu0 %v663
    %966 = vmatprep.subr.bf16.mxu0 0
    %967 = vmatpush2.bf16.msra.mxu0 0
    %968 = vmatprep.subr.bf16.mxu0 0
    %969 = vmatpush2.bf16.msra.mxu0 0
    %970 = vmatprep.subr.bf16.mxu0 0
    %971 = vmatpush2.bf16.msra.mxu0 0
    %972 = vmatprep.subr.bf16.mxu0 0
    %973 = vmatpush2.bf16.msra.mxu0 0
    %974 = vmatprep.subr.bf16.mxu0 0
    %975 = vmatpush2.bf16.msra.mxu0 0
    %976 = vmatprep.subr.bf16.mxu0 0
    %977 = vmatpush2.bf16.msra.mxu0 0
    %978 = vmatprep.subr.bf16.mxu0 0
    %979 = vmatpush2.bf16.msra.mxu0 0
    %980 = vmatprep.subr.bf16.mxu0 0
    %981 = vmatpush2.bf16.msra.mxu0 0
    %982 = vmatprep.mubr.bf16.mxu0 0
    %983 = vmatmul.mubr.bf16.gmra.mxu0 %v99
    %v984 = vpop.f32.mrf.mxu0
    %v985 = vadd.f32 %v932, %v984
    %v986 = vpop.f32.mrf.mxu0
    %v987 = vadd.f32 %v934, %v986
    %v988 = vpop.f32.mrf.mxu0
    %v989 = vadd.f32 %v936, %v988
    %v990 = vpop.f32.mrf.mxu0
    %v991 = vadd.f32 %v938, %v990
    %992 = vmatprep.mubr.bf16.mxu0 0
    %993 = vmatmul.mubr.bf16.gmra.mxu0 %v106
    %v994 = vpop.f32.mrf.mxu0
    %v995 = vadd.f32 %v942, %v994
    %v996 = vpop.f32.mrf.mxu0
    %v997 = vadd.f32 %v944, %v996
    %v998 = vpop.f32.mrf.mxu0
    %v999 = vadd.f32 %v946, %v998
    %v1000 = vpop.f32.mrf.mxu0
    %v1001 = vadd.f32 %v948, %v1000
    %1002 = vdwg.mxu0
    %v1003 = vmax.f32 %v985, 0.0
    %v1004 = vmax.f32 %v987, 0.0
    %v1005 = vmax.f32 %v989, 0.0
    %v1006 = vmax.f32 %v991, 0.0
    %v1007 = vmax.f32 %v995, 0.0
    %v1008 = vmax.f32 %v997, 0.0
    %v1009 = vmax.f32 %v999, 0.0
    %v1010 = vmax.f32 %v1001, 0.0
    %v1011 = vpack.c.bf16 %v1005, %v1003
    %v1012 = vpack.c.bf16 %v1006, %v1004
    %v1013 = vpack.c.bf16 %v1009, %v1007
    %v1014 = vpack.c.bf16 %v1010, %v1008
    %v1015 = vld [vmem:[#allocation9] sm:$0xf]
    %v1016 = vld [vmem:[#allocation9 + $0x4] sm:$0xf]
    %v1017 = vld [vmem:[#allocation9 + $0x8] sm:$0xf]
    %v1018 = vld [vmem:[#allocation9 + $0xc] sm:$0xf]
    %v1019 = vld [vmem:[#allocation9 + $0x10] sm:$0xf]
    %v1020 = vld [vmem:[#allocation9 + $0x14] sm:$0xf]
    %v1021 = vld [vmem:[#allocation9 + $0x18] sm:$0xf]
    %v1022 = vld [vmem:[#allocation9 + $0x1c] sm:$0xf]
    %v1023 = vld [vmem:[#allocation9 + $0x20] sm:$0xf]
    %v1024 = vld [vmem:[#allocation9 + $0x24] sm:$0xf]
    %v1025 = vld [vmem:[#allocation9 + $0x28] sm:$0xf]
    %v1026 = vld [vmem:[#allocation9 + $0x2c] sm:$0xf]
    %v1027 = vld [vmem:[#allocation9 + $0x30] sm:$0xf]
    %v1028 = vld [vmem:[#allocation9 + $0x34] sm:$0xf]
    %v1029 = vld [vmem:[#allocation9 + $0x38] sm:$0xf]
    %v1030 = vld [vmem:[#allocation9 + $0x3c] sm:$0xf]
    %v1031 = vld [vmem:[#allocation9 + $0x40] sm:$0xf]
    %v1032 = vld [vmem:[#allocation9 + $0x44] sm:$0xf]
    %v1033 = vld [vmem:[#allocation9 + $0x48] sm:$0xf]
    %v1034 = vld [vmem:[#allocation9 + $0x4c] sm:$0xf]
    %v1035 = vld [vmem:[#allocation9 + $0x50] sm:$0xf]
    %v1036 = vld [vmem:[#allocation9 + $0x54] sm:$0xf]
    %v1037 = vld [vmem:[#allocation9 + $0x58] sm:$0xf]
    %v1038 = vld [vmem:[#allocation9 + $0x5c] sm:$0xf]
    %v1039 = vld [vmem:[#allocation9 + $0x60] sm:$0xf]
    %v1040 = vld [vmem:[#allocation9 + $0x64] sm:$0xf]
    %v1041 = vld [vmem:[#allocation9 + $0x68] sm:$0xf]
    %v1042 = vld [vmem:[#allocation9 + $0x6c] sm:$0xf]
    %v1043 = vld [vmem:[#allocation9 + $0x70] sm:$0xf]
    %v1044 = vld [vmem:[#allocation9 + $0x74] sm:$0xf]
    %v1045 = vld [vmem:[#allocation9 + $0x78] sm:$0xf]
    %v1046 = vld [vmem:[#allocation9 + $0x7c] sm:$0xf]
    %v1047 = vld [vmem:[%s5] sm:$0x1]
    %v1049 = vlaneseq
    %v1050 = vshrl.u32 %v1049, 7
    %v1051 = vsub.s32 0, %v1050
    %v1052 = vrot.slane %v1047, %v1051
    %v1086 = vunpack.c.l.b16 %v1015
    %v1087 = vunpack.c.l.b16 %v1016
    %v1088 = vunpack.c.l.b16 %v1017
    %v1089 = vunpack.c.l.b16 %v1018
    %v1090 = vunpack.c.l.b16 %v1019
    %v1091 = vunpack.c.l.b16 %v1020
    %v1092 = vunpack.c.l.b16 %v1021
    %v1093 = vunpack.c.l.b16 %v1022
    %v1094 = vunpack.c.l.b16 %v1023
    %v1095 = vunpack.c.l.b16 %v1024
    %v1096 = vunpack.c.l.b16 %v1025
    %v1097 = vunpack.c.l.b16 %v1026
    %v1098 = vunpack.c.l.b16 %v1027
    %v1099 = vunpack.c.l.b16 %v1028
    %v1100 = vunpack.c.l.b16 %v1029
    %v1101 = vunpack.c.l.b16 %v1030
    %v1102 = vunpack.c.l.b16 %v1031
    %v1103 = vunpack.c.l.b16 %v1032
    %v1104 = vunpack.c.l.b16 %v1033
    %v1105 = vunpack.c.l.b16 %v1034
    %v1106 = vunpack.c.l.b16 %v1035
    %v1107 = vunpack.c.l.b16 %v1036
    %v1108 = vunpack.c.l.b16 %v1037
    %v1109 = vunpack.c.l.b16 %v1038
    %v1110 = vunpack.c.l.b16 %v1039
    %v1111 = vunpack.c.l.b16 %v1040
    %v1112 = vunpack.c.l.b16 %v1041
    %v1113 = vunpack.c.l.b16 %v1042
    %v1114 = vunpack.c.l.b16 %v1043
    %v1115 = vunpack.c.l.b16 %v1044
    %v1116 = vunpack.c.l.b16 %v1045
    %v1117 = vunpack.c.l.b16 %v1046
    %v1118 = vpack.c.b16 %v1087, %v1086
    %v1119 = vpack.c.b16 %v1089, %v1088
    %v1120 = vpack.c.b16 %v1091, %v1090
    %v1121 = vpack.c.b16 %v1093, %v1092
    %v1122 = vpack.c.b16 %v1095, %v1094
    %v1123 = vpack.c.b16 %v1097, %v1096
    %v1124 = vpack.c.b16 %v1099, %v1098
    %v1125 = vpack.c.b16 %v1101, %v1100
    %v1126 = vpack.c.b16 %v1103, %v1102
    %v1127 = vpack.c.b16 %v1105, %v1104
    %v1128 = vpack.c.b16 %v1107, %v1106
    %v1129 = vpack.c.b16 %v1109, %v1108
    %v1130 = vpack.c.b16 %v1111, %v1110
    %v1131 = vpack.c.b16 %v1113, %v1112
    %v1132 = vpack.c.b16 %v1115, %v1114
    %v1133 = vpack.c.b16 %v1117, %v1116
    %1150 = vmatprep.subr.bf16.mxu0 0
    %1151 = vmatpush1.bf16.msra.mxu0 %v1125
    %1152 = vmatprep.subr.bf16.mxu0 0
    %1153 = vmatpush1.bf16.msra.mxu0 %v1124
    %1154 = vmatprep.subr.bf16.mxu0 0
    %1155 = vmatpush1.bf16.msra.mxu0 %v1123
    %1156 = vmatprep.subr.bf16.mxu0 0
    %1157 = vmatpush1.bf16.msra.mxu0 %v1122
    %1158 = vmatprep.subr.bf16.mxu0 0
    %1159 = vmatpush1.bf16.msra.mxu0 %v1121
    %1160 = vmatprep.subr.bf16.mxu0 0
    %1161 = vmatpush1.bf16.msra.mxu0 %v1120
    %1162 = vmatprep.subr.bf16.mxu0 0
    %1163 = vmatpush1.bf16.msra.mxu0 %v1119
    %1164 = vmatprep.subr.bf16.mxu0 0
    %1165 = vmatpush1.bf16.msra.mxu0 %v1118
    %1166 = vmatprep.subr.bf16.mxu0 0
    %1167 = vmatpush2.bf16.msra.mxu0 %v1133
    %1168 = vmatprep.subr.bf16.mxu0 0
    %1169 = vmatpush2.bf16.msra.mxu0 %v1132
    %1170 = vmatprep.subr.bf16.mxu0 0
    %1171 = vmatpush2.bf16.msra.mxu0 %v1131
    %1172 = vmatprep.subr.bf16.mxu0 0
    %1173 = vmatpush2.bf16.msra.mxu0 %v1130
    %1174 = vmatprep.subr.bf16.mxu0 0
    %1175 = vmatpush2.bf16.msra.mxu0 %v1129
    %1176 = vmatprep.subr.bf16.mxu0 0
    %1177 = vmatpush2.bf16.msra.mxu0 %v1128
    %1178 = vmatprep.subr.bf16.mxu0 0
    %1179 = vmatpush2.bf16.msra.mxu0 %v1127
    %1180 = vmatprep.subr.bf16.mxu0 0
    %1181 = vmatpush2.bf16.msra.mxu0 %v1126
    %1182 = vmatprep.mubr.bf16.mxu0 %v1012
    %1183 = vmatmul.mubr.bf16.gmra.mxu0 %v1011
    %v1184 = vpop.f32.mrf.mxu0
    %v1185 = vadd.f32 %v1052, %v1184
    %v1186 = vpop.f32.mrf.mxu0
    %v1187 = vpop.f32.mrf.mxu0
    %v1188 = vadd.f32 %v1052, %v1187
    %v1189 = vpop.f32.mrf.mxu0
    %1190 = vmatprep.mubr.bf16.mxu0 %v1014
    %1191 = vmatmul.mubr.bf16.gmra.mxu0 %v1013
    %v1192 = vpop.f32.mrf.mxu0
    %v1193 = vadd.f32 %v1052, %v1192
    %v1194 = vpop.f32.mrf.mxu0
    %v1195 = vpop.f32.mrf.mxu0
    %v1196 = vadd.f32 %v1052, %v1195
    %v1197 = vpop.f32.mrf.mxu0
    %1198 = vdwg.mxu0
    %1199 = vst [vmem:[#allocation10] sm:$0xff] %v1185
    %1200 = vst [vmem:[#allocation10 + $0x8] sm:$0xff] %v1188
    %1201 = vst [vmem:[#allocation10 + $0x10] sm:$0xff] %v1193
    %1202 = vst [vmem:[#allocation10 + $0x18] sm:$0xff] %v1196
    // Predicated region
    $region34: #{tpu_custom_call.1} parent=1 // pred_check
      _
    $region35: #{tpu_custom_call.1} parent=1 // pred_check_branch
      %1204 = sbr.rel (0) target = $region37
    $region36: #{tpu_custom_call.1} parent=1 // pred_region
      %s1206 = ssub.s32 512, 512
      %1207 = vsyncadd [#allocation6], %s1206
      %s1208 = sshll.u32 [#allocation10], 4
      %s1209 = int_to_ptr.vmem [resolvable:$true] %s1208
      %1214 = dma.vmem_to_hbm [thread:$0]  %s1209, 512, %s6, [#allocation6], 128, 128, 8
    $region37: #{tpu_custom_call.1} parent=1 // pred_fallthru
      _
    // Predicated region
    $region38: #{tpu_custom_call.1} parent=1 // pred_check
      _
    $region39: #{tpu_custom_call.1} parent=1 // pred_check_branch
      %1216 = sbr.rel (0) target = $region41
    $region40: #{tpu_custom_call.1} parent=1 // pred_region
      %1217 = dma.done [#allocation6], 512
    $region41: #{tpu_custom_call.1} parent=1 // pred_fallthru
      _
    %1218 = vsyncpa [#allocation5], 1
    %1219 = vsyncpa [#allocation8], 1
    %1220 = vsyncpa [#allocation6], 1

</llo_original>
